<compile_context>
chip_gen: v6e
topology: v6e:2x2x1
jax: 0.10.0
libtpu: 0.0.40
codegen_flags: <defaults>
</compile_context>

<pallas_src>
import functools

import jax
import jax.numpy as jnp
import numpy as np
from jax.experimental import pallas as pl
from jax.experimental.pallas import tpu as pltpu


def _focal_loss_kernel(y_pred_ref, y_true_ref, sum_ref, cnt_ref,
                       sum_acc, cnt_acc, *,
                       gamma, ignore_index, n_rows, steps_per_core):
    p = pl.program_id(0)          # core / partial-output index ("parallel")
    i = pl.program_id(1)          # row-tile streaming index ("arbitrary")

    @pl.when(i == 0)
    def _():
        sum_acc[...] = jnp.zeros_like(sum_acc)
        cnt_acc[...] = jnp.zeros_like(cnt_acc)

    x_raw = y_pred_ref[...]                              # [tile_n, C] native dtype
    tn, c = x_raw.shape
    x = x_raw.astype(jnp.float32)                        # f32 compute on all gens

    # Labels arrive lane-dense as (1, tile_n); move to a (tile_n, 1) column on
    # the XLU (transpose slot has slack; avoids lane-padded label buffers).
    t_row = y_true_ref[0]                                # [1, tile_n] int32
    t_col = jnp.transpose(t_row, (1, 0))                 # [tile_n, 1] int32

    # Numerically stable per-row log-sum-exp over the class (lane) axis.
    m = jnp.max(x, axis=1, keepdims=True)                # [tile_n, 1]
    lse = m + jnp.log(jnp.sum(jnp.exp(x - m), axis=1, keepdims=True))

    # Row validity: not ignored, and inside the real N. The global row index
    # uses the *unclamped* tile index, so duplicated (clamped) tiles that some
    # cores re-read for ragged splits contribute exactly zero.
    row = (jax.lax.broadcasted_iota(jnp.int32, (tn, 1), 0)
           + (p * steps_per_core + i) * tn)
    valid = (t_col != ignore_index) & (row < n_rows)     # [tile_n, 1]

    # Target-class pick on the native-dtype tile (bf16 select/sum = 2x/op);
    # no `& valid` here - the final where(valid, ...) masks ignored/OOB rows.
    col = jax.lax.broadcasted_iota(jnp.int32, (tn, c), 1)
    one_hot = col == t_col                               # [tile_n, C]
    zero = jnp.zeros((), dtype=x_raw.dtype)
    x_t = jnp.sum(jnp.where(one_hot, x_raw, zero), axis=1,
                  keepdims=True).astype(jnp.float32)     # [tile_n, 1]

    # Focal modulation only at the target class ([tile_n, 1] work).
    log_pt = x_t - lse                                   # [tile_n, 1]
    pt = jnp.exp(log_pt)
    q = 1.0 - pt
    g = float(gamma)
    gi = int(g)
    if g == gi and gi >= 0:
        # Static unroll: repeated multiplies on the VPU, no EUP pow.
        modfac = jnp.ones_like(q) if gi == 0 else q
        for _ in range(max(gi - 1, 0)):
            modfac = modfac * q
    else:
        # Clamp: rounding can make pt marginally > 1, and q**g would be NaN.
        modfac = jnp.maximum(q, 0.0) ** g

    loss_col = jnp.where(valid, -(modfac * log_pt), 0.0)

    sum_acc[...] += jnp.sum(loss_col, keepdims=True)
    cnt_acc[...] += jnp.sum(valid.astype(jnp.float32), keepdims=True)

    @pl.when(i == pl.num_programs(1) - 1)
    def _():
        # Emit per-core partial (sum, count); combine + divide in the wrapper.
        sum_ref[...] = sum_acc[...].reshape(1, 1, 1)
        cnt_ref[...] = cnt_acc[...].reshape(1, 1, 1)


def focal_loss(y_pred, y_true, *, gamma=2.0, ignore_index=-100,
               tile_n=None, n_cores=2):
    """y_pred: [N, C] float (any dtype), y_true: [N] int. Scalar mean focal loss."""
    n, c = y_pred.shape
    n_pad8 = ((n + 7) // 8) * 8
    itemsize = jnp.dtype(y_pred.dtype).itemsize

    if tile_n is None:
        # Per-row VMEM footprint estimate:
        #   ~4 live [tile_n, C] f32 intermediates      -> 16*C      bytes/row
        #   double-buffered native-dtype y_pred tile   -> 2*size*C  bytes/row
        #   ~6 live [tile_n, 1] columns (lane-padded)  -> 6*512     bytes/row
        per_row = 16 * c + 2 * itemsize * c + 6 * 512
        tile_n = (28 * 1024 * 1024) // per_row
        tile_n = min(tile_n, 32768)          # sanity cap, only binds for tiny C
    tile_n = max(8, (int(tile_n) // 8) * 8)
    tile_n = int(min(tile_n, n_pad8))

    num_tiles = pl.cdiv(n, tile_n)
    n_cores = max(1, int(n_cores))
    steps_per_core = pl.cdiv(num_tiles, n_cores)

    # Lane-dense label layout: (num_tiles, 1, tile_n), padded with ignore_index
    # (cheap: labels are only N int32s).
    pad = num_tiles * tile_n - n
    labels = jnp.pad(y_true.astype(jnp.int32), (0, pad),
                     constant_values=int(ignore_index))
    labels = labels.reshape(num_tiles, 1, tile_n)

    def pred_map(p, i):
        return (jnp.minimum(p * steps_per_core + i, num_tiles - 1), 0)

    def label_map(p, i):
        return (jnp.minimum(p * steps_per_core + i, num_tiles - 1), 0, 0)

    kernel = functools.partial(
        _focal_loss_kernel,
        gamma=float(gamma),
        ignore_index=int(ignore_index),
        n_rows=int(n),
        steps_per_core=int(steps_per_core),
    )

    sums, cnts = pl.pallas_call(
        kernel,
        out_shape=(jax.ShapeDtypeStruct((n_cores, 1, 1), jnp.float32),
                   jax.ShapeDtypeStruct((n_cores, 1, 1), jnp.float32)),
        grid_spec=pltpu.PrefetchScalarGridSpec(
            num_scalar_prefetch=0,
            grid=(n_cores, steps_per_core),
            in_specs=[
                pl.BlockSpec((tile_n, c), pred_map),        # y_pred row tile
                pl.BlockSpec((1, 1, tile_n), label_map),    # lane-dense labels
            ],
            out_specs=[
                pl.BlockSpec((1, 1, 1), lambda p, i: (p, 0, 0)),  # partial sum
                pl.BlockSpec((1, 1, 1), lambda p, i: (p, 0, 0)),  # partial count
            ],
            scratch_shapes=[pltpu.VMEM((1, 1), jnp.float32),   # running loss sum
                            pltpu.VMEM((1, 1), jnp.float32)],  # running valid count
        ),
        compiler_params=pltpu.CompilerParams(
            dimension_semantics=("parallel", "arbitrary"),
            vmem_limit_bytes=48 * 1024 * 1024),
    )(y_pred, labels)

    # reduction='mean' with weight=None: sum over valid rows / #valid rows.
    return jnp.sum(sums) / jnp.sum(cnts)


def _focal_loss_ref(y_pred, y_true, *, gamma=2.0, ignore_index=-100):
    """Pure-JAX reference mirroring the PyTorch module."""
    log_pt = jax.nn.log_softmax(y_pred.astype(jnp.float32), axis=1)
    pt = jnp.exp(log_pt)
    mod = (1.0 - pt) ** gamma * log_pt
    valid = y_true != ignore_index
    tgt = jnp.where(valid, y_true, 0)
    picked = jnp.take_along_axis(mod, tgt[:, None], axis=1)[:, 0]
    picked = jnp.where(valid, picked, 0.0)
    return -jnp.sum(picked) / jnp.sum(valid.astype(jnp.float32))


if __name__ == "__main__":
    key = jax.random.PRNGKey(0)
    k1, k2, k3, k4 = jax.random.split(key, 4)

    # Case 1: single tile (N=8, C=32), one ignored row; exercises the
    # clamped/duplicated tile on the second "core" of the parallel split.
    N1, C1 = 8, 32
    yp1 = jax.random.normal(k1, (N1, C1), dtype=jnp.float32)
    yt1 = jax.random.randint(k2, (N1,), 0, C1, dtype=jnp.int32)
    yt1 = yt1.at[3].set(-100)
    out1 = focal_loss(yp1, yt1, gamma=2.0, ignore_index=-100)
    jax.block_until_ready(out1)
    ref1 = _focal_loss_ref(yp1, yt1, gamma=2.0, ignore_index=-100)
    np.testing.assert_allclose(np.asarray(out1), np.asarray(ref1),
                               rtol=1e-5, atol=1e-6)

    # Case 2: multi-step grid with ragged tail (N=20, tile_n=8 -> 3 tiles split
    # over the 2-way parallel axis), bf16 input streamed in its native dtype.
    N2, C2 = 20, 128
    yp2 = jax.random.normal(k3, (N2, C2), dtype=jnp.float32).astype(jnp.bfloat16)
    yt2 = jax.random.randint(k4, (N2,), 0, C2, dtype=jnp.int32)
    yt2 = yt2.at[0].set(-100)
    out2 = focal_loss(yp2, yt2, gamma=2.0, ignore_index=-100, tile_n=8)
    jax.block_until_ready(out2)
    ref2 = _focal_loss_ref(yp2, yt2, gamma=2.0, ignore_index=-100)
    np.testing.assert_allclose(np.asarray(out2), np.asarray(ref2),
                               rtol=1e-4, atol=1e-5)

    print("KERNEL_OK")
</pallas_src>

<mosaic_0001>
module attributes {stable_mosaic.version = 11 : i64} {
  func.func @_focal_loss_kernel(%arg0: i32, %arg1: i32, %arg2: memref<8x32xf32, #tpu.memory_space<vmem>>, %arg3: memref<1x1x8xi32, #tpu.memory_space<vmem>>, %arg4: memref<1x1x1xf32, #tpu.memory_space<vmem>>, %arg5: memref<1x1x1xf32, #tpu.memory_space<vmem>>, %arg6: memref<1x1xf32, #tpu.memory_space<vmem>>, %arg7: memref<1x1xf32, #tpu.memory_space<vmem>>) attributes {dimension_semantics = [#tpu.dimension_semantics<parallel>, #tpu.dimension_semantics<arbitrary>], iteration_bounds = array<i64: 2, 1>, scalar_prefetch = 0 : i64, scratch_operands = 2 : i64, tpu.core_type = #tpu.core_type<tc>, window_params = [{transform_indices = @transform_0, window_bounds = array<i64: 8, 32>}, {transform_indices = @transform_1, window_bounds = array<i64: 1, 1, 8>}, {transform_indices = @transform_2, window_bounds = array<i64: 1, 1, 1>}, {transform_indices = @transform_3, window_bounds = array<i64: 1, 1, 1>}]} {
    %c0_i32 = arith.constant 0 : i32
    %0 = arith.cmpi eq, %arg1, %c0_i32 : i32
    %1 = arith.extui %0 : i1 to i32
    %c0_i32_0 = arith.constant 0 : i32
    %2 = arith.cmpi ne, %1, %c0_i32_0 : i32
    scf.if %2 {
      %cst_24 = arith.constant 0.000000e+00 : f32
      %65 = vector.broadcast %cst_24 : f32 to vector<1x1xf32>
      %c0_25 = arith.constant 0 : index
      %c0_26 = arith.constant 0 : index
      %66 = vector.load %arg6[%c0_25, %c0_26] : memref<1x1xf32, #tpu.memory_space<vmem>>, vector<1x1xf32>
      tpu.vector_store %arg6[%c0_25, %c0_26], %65 {strides = array<i32>} : memref<1x1xf32, #tpu.memory_space<vmem>>, vector<1x1xf32>,
      %cst_27 = arith.constant 0.000000e+00 : f32
      %67 = vector.broadcast %cst_27 : f32 to vector<1x1xf32>
      %c0_28 = arith.constant 0 : index
      %c0_29 = arith.constant 0 : index
      %68 = vector.load %arg7[%c0_28, %c0_29] : memref<1x1xf32, #tpu.memory_space<vmem>>, vector<1x1xf32>
      tpu.vector_store %arg7[%c0_28, %c0_29], %67 {strides = array<i32>} : memref<1x1xf32, #tpu.memory_space<vmem>>, vector<1x1xf32>,
    } else {
    }
    %c0 = arith.constant 0 : index
    %c0_1 = arith.constant 0 : index
    %3 = vector.load %arg2[%c0, %c0_1] : memref<8x32xf32, #tpu.memory_space<vmem>>, vector<8x32xf32>
    %c0_2 = arith.constant 0 : index
    %c0_3 = arith.constant 0 : index
    %c0_4 = arith.constant 0 : index
    %4 = vector.load %arg3[%c0_2, %c0_3, %c0_4] : memref<1x1x8xi32, #tpu.memory_space<vmem>>, vector<1x1x8xi32>
    %5 = vector.shape_cast %4 : vector<1x1x8xi32> to vector<1x8xi32>
    %6 = tpu.transpose %5, [1, 0] : vector<1x8xi32> -> vector<8x1xi32>
    %cst = arith.constant dense<0xFF800000> : vector<8xf32>
    %7 = vector.multi_reduction <maximumf>, %3, %cst [1] : vector<8x32xf32> to vector<8xf32>
    %8 = vector.shape_cast %7 : vector<8xf32> to vector<8x1xf32>
    %9 = vector.broadcast %8 : vector<8x1xf32> to vector<8x32xf32>
    %10 = arith.subf %3, %9 : vector<8x32xf32>
    %11 = math.exp %10 : vector<8x32xf32>
    %cst_5 = arith.constant dense<0.000000e+00> : vector<8xf32>
    %12 = vector.multi_reduction <add>, %11, %cst_5 [1] : vector<8x32xf32> to vector<8xf32>
    %13 = vector.shape_cast %12 : vector<8xf32> to vector<8x1xf32>
    %14 = math.log %13 : vector<8x1xf32>
    %15 = arith.addf %8, %14 : vector<8x1xf32>
    %16 = tpu.iota {dimensions = array<i32: 0>} : vector<8x1xi32>
    %c1_i32 = arith.constant 1 : i32
    %17 = arith.muli %arg0, %c1_i32 : i32
    %18 = arith.addi %17, %arg1 : i32
    %c8_i32 = arith.constant 8 : i32
    %19 = arith.muli %18, %c8_i32 : i32
    %20 = vector.broadcast %19 : i32 to vector<8x1xi32>
    %21 = arith.addi %16, %20 : vector<8x1xi32>
    %c-100_i32 = arith.constant -100 : i32
    %22 = vector.broadcast %c-100_i32 : i32 to vector<8x1xi32>
    %23 = arith.cmpi ne, %6, %22 : vector<8x1xi32>
    %c8_i32_6 = arith.constant 8 : i32
    %24 = vector.broadcast %c8_i32_6 : i32 to vector<8x1xi32>
    %25 = arith.cmpi slt, %21, %24 : vector<8x1xi32>
    %26 = arith.andi %23, %25 : vector<8x1xi1>
    %27 = tpu.iota {dimensions = array<i32: 1>} : vector<8x32xi32>
    %28 = vector.broadcast %6 : vector<8x1xi32> to vector<8x32xi32>
    %29 = arith.cmpi eq, %27, %28 : vector<8x32xi32>
    %cst_7 = arith.constant 0.000000e+00 : f32
    %30 = vector.broadcast %cst_7 : f32 to vector<8x32xf32>
    %31 = arith.select %29, %3, %30 : vector<8x32xi1>, vector<8x32xf32>
    %cst_8 = arith.constant dense<0.000000e+00> : vector<8xf32>
    %32 = vector.multi_reduction <add>, %31, %cst_8 [1] : vector<8x32xf32> to vector<8xf32>
    %33 = vector.shape_cast %32 : vector<8xf32> to vector<8x1xf32>
    %34 = arith.subf %33, %15 : vector<8x1xf32>
    %35 = math.exp %34 : vector<8x1xf32>
    %cst_9 = arith.constant 1.000000e+00 : f32
    %36 = vector.broadcast %cst_9 : f32 to vector<8x1xf32>
    %37 = arith.subf %36, %35 : vector<8x1xf32>
    %38 = arith.mulf %37, %37 : vector<8x1xf32>
    %39 = arith.mulf %38, %34 : vector<8x1xf32>
    %cst_10 = arith.constant 0.000000e+00 : f32
    %40 = vector.broadcast %cst_10 : f32 to vector<8x1xf32>
    %41 = arith.subf %40, %39 : vector<8x1xf32>
    %cst_11 = arith.constant 0.000000e+00 : f32
    %42 = vector.broadcast %cst_11 : f32 to vector<8x1xf32>
    %43 = arith.select %26, %41, %42 : vector<8x1xi1>, vector<8x1xf32>
    %c0_12 = arith.constant 0 : index
    %c0_13 = arith.constant 0 : index
    %44 = vector.load %arg6[%c0_12, %c0_13] : memref<1x1xf32, #tpu.memory_space<vmem>>, vector<1x1xf32>
    %45 = vector.shape_cast %43 : vector<8x1xf32> to vector<1x8x1xf32>
    %cst_14 = arith.constant dense<0.000000e+00> : vector<1xf32>
    %46 = vector.multi_reduction <add>, %45, %cst_14 [1, 2] : vector<1x8x1xf32> to vector<1xf32>
    %47 = vector.shape_cast %46 : vector<1xf32> to vector<1x1x1xf32>
    %48 = vector.extract %47[0, 0, 0] : f32 from vector<1x1x1xf32>
    %49 = vector.broadcast %48 : f32 to vector<1x1xf32>
    %50 = arith.addf %44, %49 : vector<1x1xf32>
    %c0_15 = arith.constant 0 : index
    %c0_16 = arith.constant 0 : index
    %51 = vector.load %arg6[%c0_15, %c0_16] : memref<1x1xf32, #tpu.memory_space<vmem>>, vector<1x1xf32>
    tpu.vector_store %arg6[%c0_15, %c0_16], %50 {strides = array<i32>} : memref<1x1xf32, #tpu.memory_space<vmem>>, vector<1x1xf32>,
    %c0_17 = arith.constant 0 : index
    %c0_18 = arith.constant 0 : index
    %52 = vector.load %arg7[%c0_17, %c0_18] : memref<1x1xf32, #tpu.memory_space<vmem>>, vector<1x1xf32>
    %53 = arith.extui %26 : vector<8x1xi1> to vector<8x1xi32>
    %54 = arith.sitofp %53 : vector<8x1xi32> to vector<8x1xf32>
    %55 = vector.shape_cast %54 : vector<8x1xf32> to vector<1x8x1xf32>
    %cst_19 = arith.constant dense<0.000000e+00> : vector<1xf32>
    %56 = vector.multi_reduction <add>, %55, %cst_19 [1, 2] : vector<1x8x1xf32> to vector<1xf32>
    %57 = vector.shape_cast %56 : vector<1xf32> to vector<1x1x1xf32>
    %58 = vector.extract %57[0, 0, 0] : f32 from vector<1x1x1xf32>
    %59 = vector.broadcast %58 : f32 to vector<1x1xf32>
    %60 = arith.addf %52, %59 : vector<1x1xf32>
    %c0_20 = arith.constant 0 : index
    %c0_21 = arith.constant 0 : index
    %61 = vector.load %arg7[%c0_20, %c0_21] : memref<1x1xf32, #tpu.memory_space<vmem>>, vector<1x1xf32>
    tpu.vector_store %arg7[%c0_20, %c0_21], %60 {strides = array<i32>} : memref<1x1xf32, #tpu.memory_space<vmem>>, vector<1x1xf32>,
    %c0_i32_22 = arith.constant 0 : i32
    %62 = arith.cmpi eq, %arg1, %c0_i32_22 : i32
    %63 = arith.extui %62 : i1 to i32
    %c0_i32_23 = arith.constant 0 : i32
    %64 = arith.cmpi ne, %63, %c0_i32_23 : i32
    scf.if %64 {
      %c0_24 = arith.constant 0 : index
      %c0_25 = arith.constant 0 : index
      %65 = vector.load %arg6[%c0_24, %c0_25] : memref<1x1xf32, #tpu.memory_space<vmem>>, vector<1x1xf32>
      %66 = vector.shape_cast %65 : vector<1x1xf32> to vector<1x1x1xf32>
      %c0_26 = arith.constant 0 : index
      %c0_27 = arith.constant 0 : index
      %c0_28 = arith.constant 0 : index
      %67 = vector.load %arg4[%c0_26, %c0_27, %c0_28] : memref<1x1x1xf32, #tpu.memory_space<vmem>>, vector<1x1x1xf32>
      tpu.vector_store %arg4[%c0_26, %c0_27, %c0_28], %66 {strides = array<i32>} : memref<1x1x1xf32, #tpu.memory_space<vmem>>, vector<1x1x1xf32>,
      %c0_29 = arith.constant 0 : index
      %c0_30 = arith.constant 0 : index
      %68 = vector.load %arg7[%c0_29, %c0_30] : memref<1x1xf32, #tpu.memory_space<vmem>>, vector<1x1xf32>
      %69 = vector.shape_cast %68 : vector<1x1xf32> to vector<1x1x1xf32>
      %c0_31 = arith.constant 0 : index
      %c0_32 = arith.constant 0 : index
      %c0_33 = arith.constant 0 : index
      %70 = vector.load %arg5[%c0_31, %c0_32, %c0_33] : memref<1x1x1xf32, #tpu.memory_space<vmem>>, vector<1x1x1xf32>
      tpu.vector_store %arg5[%c0_31, %c0_32, %c0_33], %69 {strides = array<i32>} : memref<1x1x1xf32, #tpu.memory_space<vmem>>, vector<1x1x1xf32>,
    } else {
    }
    return
  }
  func.func @transform_0(%arg0: i32, %arg1: i32) -> (i32, i32) {
    %c1_i32 = arith.constant 1 : i32
    %0 = arith.muli %arg0, %c1_i32 : i32
    %1 = arith.addi %0, %arg1 : i32
    %c0_i32 = arith.constant 0 : i32
    %2 = arith.minsi %1, %c0_i32 : i32
    %c0_i32_0 = arith.constant 0 : i32
    %c0_i32_1 = arith.constant 0 : i32
    return %2, %c0_i32_0 : i32, i32
  }
  func.func @transform_1(%arg0: i32, %arg1: i32) -> (i32, i32, i32) {
    %c1_i32 = arith.constant 1 : i32
    %0 = arith.muli %arg0, %c1_i32 : i32
    %1 = arith.addi %0, %arg1 : i32
    %c0_i32 = arith.constant 0 : i32
    %2 = arith.minsi %1, %c0_i32 : i32
    %c0_i32_0 = arith.constant 0 : i32
    %c0_i32_1 = arith.constant 0 : i32
    %c0_i32_2 = arith.constant 0 : i32
    return %2, %c0_i32_0, %c0_i32_1 : i32, i32, i32
  }
  func.func @transform_2(%arg0: i32, %arg1: i32) -> (i32, i32, i32) {
    %c0_i32 = arith.constant 0 : i32
    %c0_i32_0 = arith.constant 0 : i32
    %c0_i32_1 = arith.constant 0 : i32
    return %arg0, %c0_i32, %c0_i32_0 : i32, i32, i32
  }
  func.func @transform_3(%arg0: i32, %arg1: i32) -> (i32, i32, i32) {
    %c0_i32 = arith.constant 0 : i32
    %c0_i32_0 = arith.constant 0 : i32
    %c0_i32_1 = arith.constant 0 : i32
    return %arg0, %c0_i32, %c0_i32_0 : i32, i32, i32
  }
}

</mosaic_0001>

<llo_original>
// kernel: tpu_custom_call.1
$region0: #{tpu_custom_call.1}
  #allocation0 [shape = 'u32[]', space=smem, size = 0x4, offset = 0x4, fixed_abs, tag = 'smem constant byte address 0x4 - core index']
  #allocation1 [shape = 'u32[144,128]{1,0:T(1,128)}', space=vmem, size = 0x12000, scoped, tag = 'internal scratch']
  #allocation2 [shape = 'f32[1,1]{1,0:T(1,128)}', space=vmem, size = 0x200, scoped, tag = 'scratch operand']
  #allocation3 [shape = 'f32[1,1]{1,0:T(1,128)}', space=vmem, size = 0x200, scoped, tag = 'scratch operand']
  %s0 = inlined_call_operand.hbm [shape: f32[8,32], index: 0, kind: input, shape index: {}]
  %s1 = inlined_call_operand.vmem [shape: s32[1,1,8], index: 1, kind: input, shape index: {}]
  %s2 = inlined_call_operand.vmem [shape: f32[2,1,1], index: 2, kind: output, shape index: {0}]
  %s3 = inlined_call_operand.vmem [shape: f32[2,1,1], index: 3, kind: output, shape index: {1}]
  %4 = xla_tuple %s2, %s3
  %s5 = sld [smem:[#allocation0]]
  $region61: #{tpu_custom_call.1} parent=0
    _
  %s7 = ssub.s32 1, %s5
  %s8 = scalar_select 0, %s7, %s5
  $region1: #{tpu_custom_call.1} parent=0
    #allocation4 [shape = 'u8[8192]{0}', space=vmem, size = 0x2000, scoped, tag = 'input window, operand 0']
    #allocation5 [shape = 's32[2]{0}', space=sflag, size = 0x8, scoped, tag = 'scoped memory for tpu_custom_call.1']
    %9 = vsyncpa [#allocation5], 0
    %s10 = scalar_lea.sflag [#allocation5], 1
    %11 = vsyncpa %s10, 0
    loop: start=0, step=1, limit=4
    $region2: #{tpu_custom_call.1} parent=1 // loop_pre_header
      _
    $region3: #{tpu_custom_call.1} parent=1 // loop_header
      %s13 = sphi 0, %s17
      %p14 = scmp.ge.s32.totalorder %s13, 4
      %s20 = sphi 0, %s32
      %s21 = sphi 0, %s28
      %s22 = sphi 0, %s20
      %s23 = sphi 0, %s21
      %s24 = sphi 0, %s22
      %s25 = sphi 0, %s23
      %s41 = sphi 0, %s43
      %s44 = sphi 0, %s41
      %s45 = sphi 0, %s44
      %s61 = sphi 0, %s45
      %s73 = sphi 0, %s75
      %s76 = sphi 0, %s73
      %s77 = sphi 0, %s76
      %s93 = sphi 0, %s77
      %s99 = sphi 0, %s101
      %s102 = sphi 0, %s99
      %s103 = sphi 0, %s102
      %s119 = sphi 0, %s103
      %s125 = sphi 0, %s127
      %s128 = sphi 0, %s125
      %s129 = sphi 0, %s128
      %s145 = sphi 0, %s129
    $region4: #{tpu_custom_call.1} parent=1 // loop_header_branch
      %16 = sbr.rel (%p14) target = $region8
    $region5: #{tpu_custom_call.1} parent=1 // loop_body
      %s18 = ssub.s32 %s13, 1
      %s19 = ssub.s32 %s13, 2
      %s26 = sadd.s32 1, %s21
      %p27 = scmp.ge.s32.totalorder %s26, 1
      %s28 = scalar_select %p27, 0, %s26
      %s29 = sadd.s32 1, %s20
      %s30 = scalar_select %p27, %s29, %s20
      %p31 = scmp.ge.s32.totalorder %s30, 2
      %s32 = scalar_select %p31, 0, %s30
      %s33 = sadd.s32 %s20, %s21
      %p34 = scmp.lt.s32.totalorder %s33, 0
      %s35 = scalar_select %p34, %s33, 0
      %s36 = sadd.s32 %s32, %s28
      %p37 = scmp.lt.s32.totalorder %s36, 0
      %s38 = scalar_select %p37, %s36, 0
      %s39 = ssub.s32 %s35, %s38
      %p40 = scmp.eq.s32.totalorder %s39, 0
      %s42 = sadd.s32 %s41, 1
      %s43 = scalar_select %p40, %s41, %s42
      %p46 = pneg %p40
      %p47 = scmp.eq.s32.totalorder %s13, 1
      %p48 = por %p46, %p47
      %p49 = scmp.ne.s32.totalorder %s41, %s44
      %p50 = scmp.eq.s32.totalorder %s13, 0
      %p51 = por %p49, %p50
      %p52 = scmp.ne.s32.totalorder %s41, %s44
      %p53 = scmp.eq.s32.totalorder %s18, 1
      %p54 = por %p52, %p53
      %p55 = scmp.ne.s32.totalorder %s44, %s45
      %p56 = scmp.eq.s32.totalorder %s18, 0
      %p57 = por %p55, %p56
      %p58 = scmp.ne.s32.totalorder %s44, %s45
      %p59 = scmp.eq.s32.totalorder %s19, 1
      %p60 = por %p58, %p59
      %p62 = scmp.ne.s32.totalorder %s45, %s61
      %p63 = scmp.eq.s32.totalorder %s19, 0
      %p64 = por %p62, %p63
      %s65 = sadd.s32 %s20, %s21
      %p66 = scmp.lt.s32.totalorder %s65, 0
      %s67 = scalar_select %p66, %s65, 0
      %s68 = sadd.s32 %s32, %s28
      %p69 = scmp.lt.s32.totalorder %s68, 0
      %s70 = scalar_select %p69, %s68, 0
      %s71 = ssub.s32 %s67, %s70
      %p72 = scmp.eq.s32.totalorder %s71, 0
      %s74 = sadd.s32 %s73, 1
      %s75 = scalar_select %p72, %s73, %s74
      %p78 = pneg %p72
      %p79 = scmp.eq.s32.totalorder %s13, 1
      %p80 = por %p78, %p79
      %p81 = scmp.ne.s32.totalorder %s73, %s76
      %p82 = scmp.eq.s32.totalorder %s13, 0
      %p83 = por %p81, %p82
      %p84 = scmp.ne.s32.totalorder %s73, %s76
      %p85 = scmp.eq.s32.totalorder %s18, 1
      %p86 = por %p84, %p85
      %p87 = scmp.ne.s32.totalorder %s76, %s77
      %p88 = scmp.eq.s32.totalorder %s18, 0
      %p89 = por %p87, %p88
      %p90 = scmp.ne.s32.totalorder %s76, %s77
      %p91 = scmp.eq.s32.totalorder %s19, 1
      %p92 = por %p90, %p91
      %p94 = scmp.ne.s32.totalorder %s77, %s93
      %p95 = scmp.eq.s32.totalorder %s19, 0
      %p96 = por %p94, %p95
      %s97 = ssub.s32 %s20, %s32
      %p98 = scmp.eq.s32.totalorder %s97, 0
      %s100 = sadd.s32 %s99, 1
      %s101 = scalar_select %p98, %s99, %s100
      %p104 = pneg %p98
      %p105 = scmp.eq.s32.totalorder %s13, 1
      %p106 = por %p104, %p105
      %p107 = scmp.ne.s32.totalorder %s99, %s102
      %p108 = scmp.eq.s32.totalorder %s13, 0
      %p109 = por %p107, %p108
      %p110 = scmp.ne.s32.totalorder %s99, %s102
      %p111 = scmp.eq.s32.totalorder %s18, 1
      %p112 = por %p110, %p111
      %p113 = scmp.ne.s32.totalorder %s102, %s103
      %p114 = scmp.eq.s32.totalorder %s18, 0
      %p115 = por %p113, %p114
      %p116 = scmp.ne.s32.totalorder %s102, %s103
      %p117 = scmp.eq.s32.totalorder %s19, 1
      %p118 = por %p116, %p117
      %p120 = scmp.ne.s32.totalorder %s103, %s119
      %p121 = scmp.eq.s32.totalorder %s19, 0
      %p122 = por %p120, %p121
      %s123 = ssub.s32 %s20, %s32
      %p124 = scmp.eq.s32.totalorder %s123, 0
      %s126 = sadd.s32 %s125, 1
      %s127 = scalar_select %p124, %s125, %s126
      %p130 = pneg %p124
      %p131 = scmp.eq.s32.totalorder %s13, 1
      %p132 = por %p130, %p131
      %p133 = scmp.ne.s32.totalorder %s125, %s128
      %p134 = scmp.eq.s32.totalorder %s13, 0
      %p135 = por %p133, %p134
      %p136 = scmp.ne.s32.totalorder %s125, %s128
      %p137 = scmp.eq.s32.totalorder %s18, 1
      %p138 = por %p136, %p137
      %p139 = scmp.ne.s32.totalorder %s128, %s129
      %p140 = scmp.eq.s32.totalorder %s18, 0
      %p141 = por %p139, %p140
      %p142 = scmp.ne.s32.totalorder %s128, %s129
      %p143 = scmp.eq.s32.totalorder %s19, 1
      %p144 = por %p142, %p143
      %p146 = scmp.ne.s32.totalorder %s129, %s145
      %p147 = scmp.eq.s32.totalorder %s19, 0
      %p148 = por %p146, %p147
      %p149 = scmp.le.s32.totalorder 1, %s13
      %p150 = scmp.lt.s32.totalorder %s13, 3
      %p151 = pnand %p149, %p150
      %p152 = pneg %p151
      // Predicated region
      $region9: #{tpu_custom_call.1} parent=5 // pred_check
        _
      $region10: #{tpu_custom_call.1} parent=5 // pred_check_branch
        %154 = sbr.rel (%p151) target = $region12
      $region11: #{tpu_custom_call.1} parent=5 // pred_region
        %s155 = ssub.s32 %s13, 1
      $region12: #{tpu_custom_call.1} parent=5 // pred_fallthru
        _
      %p156 = scmp.lt.s32.totalorder %s13, 2
      // Predicated region
      $region13: #{tpu_custom_call.1} parent=5 // pred_check
        %p157 = pneg %p156
      $region14: #{tpu_custom_call.1} parent=5 // pred_check_branch
        %159 = sbr.rel (%p157) target = $region16
      $region15: #{tpu_custom_call.1} parent=5 // pred_region
        // Predicated region
        $region17: #{tpu_custom_call.1} parent=15 // pred_check
          %p160 = pneg %p51
        $region18: #{tpu_custom_call.1} parent=15 // pred_check_branch
          %162 = sbr.rel (%p160) target = $region20
        $region19: #{tpu_custom_call.1} parent=15 // pred_region
          %s163 = sand.u32 %s41, 1
          %s164 = scalar_lea.sflag [#allocation5], %s163
          %s165 = sand.u32 %s41, 1
          %s166 = smul.addr %s165, 8
          %s167 = scalar_lea.vmem [#allocation4], %s166
          %s168 = sadd.s32 %s20, %s21
          %p169 = scmp.lt.s32.totalorder %s168, 0
          %s170 = scalar_select %p169, %s168, 0
          %s172 = ssub.s32 128, 128
          %173 = vsyncadd %s164, %s172
          %s174 = smul.addr %s170, 128
          %s175 = scalar_lea.hbm %s0, %s174
          %s177 = sshll.u32 %s167, 4
          %s178 = int_to_ptr.vmem [resolvable:$true] %s177
          %180 = dma.hbm_to_vmem [thread:$0]  %s175, 128, %s178, %s164
        $region20: #{tpu_custom_call.1} parent=15 // pred_fallthru
          _
        // Predicated region
        $region21: #{tpu_custom_call.1} parent=15 // pred_check
          %p181 = pneg %p83
        $region22: #{tpu_custom_call.1} parent=15 // pred_check_branch
          %183 = sbr.rel (%p181) target = $region24
        $region23: #{tpu_custom_call.1} parent=15 // pred_region
          %s184 = sadd.s32 %s20, %s21
          %p185 = scmp.lt.s32.totalorder %s184, 0
          %s186 = scalar_select %p185, %s184, 0
          %p187 = scmp.lt.s32.totalorder %s186, 0
          %s188 = scalar_select %p187, %s186, 0
          %s189 = scalar_lea.vmem %s1, %s188
          %s190 = sadd.s32 %s20, %s21
          %p191 = scmp.lt.s32.totalorder %s190, 0
          %s192 = scalar_select %p191, %s190, 0
        $region24: #{tpu_custom_call.1} parent=15 // pred_fallthru
          _
      $region16: #{tpu_custom_call.1} parent=5 // pred_fallthru
        _
      %p193 = scmp.le.s32.totalorder 1, %s13
      %p194 = scmp.lt.s32.totalorder %s13, 3
      %p195 = pnand %p193, %p194
      %p196 = pneg %p195
      // Predicated region
      $region25: #{tpu_custom_call.1} parent=5 // pred_check
        _
      $region26: #{tpu_custom_call.1} parent=5 // pred_check_branch
        %198 = sbr.rel (%p195) target = $region28
      $region27: #{tpu_custom_call.1} parent=5 // pred_region
        %s199 = ssub.s32 %s13, 1
        %s200 = sand.u32 %s44, 1
        %s201 = scalar_lea.sflag [#allocation5], %s200
        %s202 = sand.u32 %s44, 1
        %s203 = smul.addr %s202, 8
        %s204 = scalar_lea.vmem [#allocation4], %s203
        // Predicated region
        $region29: #{tpu_custom_call.1} parent=27 // pred_check
          %p205 = pneg %p57
        $region30: #{tpu_custom_call.1} parent=27 // pred_check_branch
          %207 = sbr.rel (%p205) target = $region32
        $region31: #{tpu_custom_call.1} parent=27 // pred_region
          %208 = dma.done %s201, 128
        $region32: #{tpu_custom_call.1} parent=27 // pred_fallthru
          _
        %s209 = sand.u32 %s44, 1
        %s210 = scalar_lea.sflag [#allocation5], %s209
        %s211 = sand.u32 %s44, 1
        %s212 = smul.addr %s211, 8
        %s213 = scalar_lea.vmem [#allocation4], %s212
        %p214 = pneg %p57
        %p215 = pneg %p54
        %s216 = sadd.s32 %s22, %s23
        %p217 = scmp.lt.s32.totalorder %s216, 0
        %s218 = scalar_select %p217, %s216, 0
        %p219 = scmp.lt.s32.totalorder %s218, 0
        %s220 = scalar_select %p219, %s218, 0
        %s221 = scalar_lea.vmem %s1, %s220
        %p222 = pneg %p89
        %p223 = pneg %p86
        %p224 = pneg %p115
        %p225 = pneg %p112
        %p226 = scmp.lt.s32.totalorder %s22, 1
        %s227 = scalar_select %p226, %s22, 1
        %s228 = scalar_lea.vmem %s2, %s227
        %p229 = pneg %p141
        %p230 = pneg %p138
        %p231 = scmp.lt.s32.totalorder %s22, 1
        %s232 = scalar_select %p231, %s22, 1
        %s233 = scalar_lea.vmem %s3, %s232
        %s234 = sadd.s32 %s22, %s23
        %p235 = scmp.lt.s32.totalorder %s234, 0
        %s236 = scalar_select %p235, %s234, 0
        %s237 = sadd.s32 %s22, %s23
        %p238 = scmp.lt.s32.totalorder %s237, 0
        %s239 = scalar_select %p238, %s237, 0
        %p240 = scmp.lt.s32.totalorder %s239, 0
        %s241 = scalar_select %p240, %s239, 0
        %s242 = scalar_lea.vmem %s1, %s241
        %s243 = sadd.s32 %s22, %s23
        %p244 = scmp.lt.s32.totalorder %s243, 0
        %s245 = scalar_select %p244, %s243, 0
        %p246 = scmp.lt.s32.totalorder %s22, 1
        %s247 = scalar_select %p246, %s22, 1
        %s248 = scalar_lea.vmem %s2, %s247
        %p249 = scmp.lt.s32.totalorder %s22, 1
        %s250 = scalar_select %p249, %s22, 1
        %s251 = scalar_lea.vmem %s3, %s250
        %p252 = scmp.eq.s32.totalorder %s23, 0
        // Predicated region
        $region33: #{tpu_custom_call.1} parent=27 // pred_check
          %p253 = pneg %p252
        $region34: #{tpu_custom_call.1} parent=27 // pred_check_branch
          %255 = sbr.rel (%p253) target = $region36
        $region35: #{tpu_custom_call.1} parent=27 // pred_region
          %vm256 = vcmask 0
          %257 = vst.msk [vmem:[#allocation2] sm:$0x1] %vm256, 0.0
          %258 = vst.msk [vmem:[#allocation3] sm:$0x1] %vm256, 0.0
        $region36: #{tpu_custom_call.1} parent=27 // pred_fallthru
          _
        %v259 = vld [vmem:[%s204] sm:$0xff]
        %v260 = vld [vmem:[%s242] sm:$0x1]
        %261 = vxpose.xlu0.b32.start [1/16] %v260, 128
        %262 = vxpose.xlu0.b32.cont [2/16] 0, 128
        %263 = vxpose.xlu0.b32.cont [3/16] 0, 128
        %264 = vxpose.xlu0.b32.cont [4/16] 0, 128
        %265 = vxpose.xlu0.b32.cont [5/16] 0, 128
        %266 = vxpose.xlu0.b32.cont [6/16] 0, 128
        %267 = vxpose.xlu0.b32.cont [7/16] 0, 128
        %268 = vxpose.xlu0.b32.cont [8/16] 0, 128
        %269 = vxpose.xlu0.b32.cont [9/16] 0, 128
        %270 = vxpose.xlu0.b32.cont [10/16] 0, 128
        %271 = vxpose.xlu0.b32.cont [11/16] 0, 128
        %272 = vxpose.xlu0.b32.cont [12/16] 0, 128
        %273 = vxpose.xlu0.b32.cont [13/16] 0, 128
        %274 = vxpose.xlu0.b32.cont [14/16] 0, 128
        %275 = vxpose.xlu0.b32.cont [15/16] 0, 128
        %276 = vxpose.xlu0.b32.end [16/16] 0, 128
        %v277 = vpop.trf.xlu0
        %v278 = vpop.trf.xlu0
        %v279 = vpop.trf.xlu0
        %v280 = vpop.trf.xlu0
        %v281 = vpop.trf.xlu0
        %v282 = vpop.trf.xlu0
        %v283 = vpop.trf.xlu0
        %v284 = vpop.trf.xlu0
        %v285 = vpop.trf.xlu0
        %v286 = vpop.trf.xlu0
        %v287 = vpop.trf.xlu0
        %v288 = vpop.trf.xlu0
        %v289 = vpop.trf.xlu0
        %v290 = vpop.trf.xlu0
        %v291 = vpop.trf.xlu0
        %v292 = vpop.trf.xlu0
        %vm293 = vcmask 261120
        %v294 = vsel %vm293, %v259, -inf
        %295 = vmax.xlane.f32.xlu0 %v294
        %v296 = vpop.xlane.xlu0 %295
        %v297 = vsub.f32 %v259, %v296
        %v298 = vmul.f32 %v297, 1.442695
        %v299 = vpow.pop %v298
        %v300 = vsel %vm293, %v299, 0.0
        %301 = vadd.xlane.f32.xlu0 %v300
        %v302 = vpop.xlane.xlu0 %301
        %v303 = vlog2.pop %v302
        %v304 = vmul.f32 %v303, 0.6931472
        %v305 = vadd.f32 %v296, %v304
        %v306 = vlaneseq
        %v307 = vshrl.u32 %v306, 7
        %s308 = sadd.s32 %s22, %s23
        %s309 = smul.u32 %s308, 8
        %v310 = vstv %s309
        %v311 = vadd.s32 %v307, %v310
        %vm312 = vcmp.ne.s32.totalorder %v277, 4294967196
        %vm313 = vcmp.lt.s32.totalorder %v311, 8
        %vm314 = vmand %vm312, %vm313
        %v315 = vlaneseq
        %v316 = vand.u32 %v315, 127
        %317 = vset.pattern.permute.xlu0 0
        %318 = vperm.xlu0 %317, %v277
        %v319 = vpop.permute.xlu0 %318
        %vm320 = vcmp.eq.s32.totalorder %v316, %v319
        %v321 = vsel %vm320, %v259, 0.0
        %v322 = vsel %vm293, %v321, 0.0
        %323 = vadd.xlane.f32.xlu0 %v322
        %v324 = vpop.xlane.xlu0 %323
        %v325 = vsub.f32 %v324, %v305
        %v326 = vmul.f32 %v325, 1.442695
        %v327 = vpow.pop %v326
        %v328 = vsub.f32 1.0, %v327
        %v329 = vmul.f32 %v328, %v328
        %v330 = vmul.f32 %v329, %v325
        %v331 = vsub.f32 0.0, %v330
        %v332 = vsel %vm314, %v331, 0.0
        %v333 = vld [vmem:[#allocation2] sm:$0x1]
        %vm334 = vcmask 7168
        %v335 = vsel %vm334, %v332, 0.0
        %336 = vadd.xlane.f32.xlu0 %v335
        %v337 = vpop.xlane.xlu0 %336
        %v338 = vrot.slane %v337, 4
        %v339 = vadd.f32 %v337, %v338
        %v340 = vrot.slane %v339, 2
        %v341 = vadd.f32 %v339, %v340
        %v342 = vrot.slane %v341, 1
        %v343 = vadd.f32 %v341, %v342
        %s344 = vtos %v343
        %v345 = vstv %s344
        %v346 = vadd.f32 %v333, %v345
        %vm347 = vcmask 0
        %348 = vst.msk [vmem:[#allocation2] sm:$0x1] %vm347, %v346
        %v349 = vld [vmem:[#allocation3] sm:$0x1]
        %v350 = vsel %vm314, 1, 0
        %v351 = vcvt.s32.f32 %v350
        %v352 = vsel %vm334, %v351, 0.0
        %353 = vadd.xlane.f32.xlu0 %v352
        %v354 = vpop.xlane.xlu0 %353
        %v355 = vrot.slane %v354, 4
        %v356 = vadd.f32 %v354, %v355
        %v357 = vrot.slane %v356, 2
        %v358 = vadd.f32 %v356, %v357
        %v359 = vrot.slane %v358, 1
        %v360 = vadd.f32 %v358, %v359
        %s361 = vtos %v360
        %v362 = vstv %s361
        %v363 = vadd.f32 %v349, %v362
        %364 = vst.msk [vmem:[#allocation3] sm:$0x1] %vm347, %v363
        // Predicated region
        $region37: #{tpu_custom_call.1} parent=27 // pred_check
          %p365 = pneg %p252
        $region38: #{tpu_custom_call.1} parent=27 // pred_check_branch
          %367 = sbr.rel (%p365) target = $region40
        $region39: #{tpu_custom_call.1} parent=27 // pred_region
          %v368 = vld [vmem:[#allocation2] sm:$0x1]
          %369 = vst.msk [vmem:[%s248] sm:$0x1] %vm347, %v368
          %v370 = vld [vmem:[#allocation3] sm:$0x1]
          %371 = vst.msk [vmem:[%s251] sm:$0x1] %vm347, %v370
        $region40: #{tpu_custom_call.1} parent=27 // pred_fallthru
          _
        %p372 = scmp.lt.s32.totalorder %s22, 1
        %s373 = scalar_select %p372, %s22, 1
        %s374 = scalar_lea.vmem %s2, %s373
        %p375 = scmp.lt.s32.totalorder %s22, 1
        %s376 = scalar_select %p375, %s22, 1
        %s377 = scalar_lea.vmem %s3, %s376
        // Predicated region
        $region41: #{tpu_custom_call.1} parent=27 // pred_check
          %p378 = pneg %p112
        $region42: #{tpu_custom_call.1} parent=27 // pred_check_branch
          %380 = sbr.rel (%p378) target = $region44
        $region43: #{tpu_custom_call.1} parent=27 // pred_region
          _
        $region44: #{tpu_custom_call.1} parent=27 // pred_fallthru
          _
        // Predicated region
        $region45: #{tpu_custom_call.1} parent=27 // pred_check
          %p381 = pneg %p138
        $region46: #{tpu_custom_call.1} parent=27 // pred_check_branch
          %383 = sbr.rel (%p381) target = $region48
        $region47: #{tpu_custom_call.1} parent=27 // pred_region
          _
        $region48: #{tpu_custom_call.1} parent=27 // pred_fallthru
          _
      $region28: #{tpu_custom_call.1} parent=5 // pred_fallthru
        _
      %p384 = scmp.le.s32.totalorder 2, %s13
      // Predicated region
      $region49: #{tpu_custom_call.1} parent=5 // pred_check
        %p385 = pneg %p384
      $region50: #{tpu_custom_call.1} parent=5 // pred_check_branch
        %387 = sbr.rel (%p385) target = $region52
      $region51: #{tpu_custom_call.1} parent=5 // pred_region
        %s388 = ssub.s32 %s13, 2
        // Predicated region
        $region53: #{tpu_custom_call.1} parent=51 // pred_check
          %p389 = pneg %p118
        $region54: #{tpu_custom_call.1} parent=51 // pred_check_branch
          %391 = sbr.rel (%p389) target = $region56
        $region55: #{tpu_custom_call.1} parent=51 // pred_region
          %p392 = scmp.lt.s32.totalorder %s24, 1
          %s393 = scalar_select %p392, %s24, 1
          %s394 = scalar_lea.vmem %s2, %s393
        $region56: #{tpu_custom_call.1} parent=51 // pred_fallthru
          _
        // Predicated region
        $region57: #{tpu_custom_call.1} parent=51 // pred_check
          %p395 = pneg %p144
        $region58: #{tpu_custom_call.1} parent=51 // pred_check_branch
          %397 = sbr.rel (%p395) target = $region60
        $region59: #{tpu_custom_call.1} parent=51 // pred_region
          %p398 = scmp.lt.s32.totalorder %s24, 1
          %s399 = scalar_select %p398, %s24, 1
          %s400 = scalar_lea.vmem %s3, %s399
        $region60: #{tpu_custom_call.1} parent=51 // pred_fallthru
          _
      $region52: #{tpu_custom_call.1} parent=5 // pred_fallthru
        _
    $region6: #{tpu_custom_call.1} parent=1 // loop_footer
      %s17 = sadd.s32 1, %s13
    $region7: #{tpu_custom_call.1} parent=1 // loop_footer_branch
      %12 = sbr.rel target = $region3
    $region8: #{tpu_custom_call.1} parent=1 // loop_exit
      _
    %401 = vsyncpa [#allocation5], 1
    %s402 = scalar_lea.sflag [#allocation5], 1
    %403 = vsyncpa %s402, 1

</llo_original>
